<compile_context>
chip_gen: v6e
topology: v6e:2x2x1
jax: 0.10.0
libtpu: 0.0.40
codegen_flags: <defaults>
</compile_context>

<pallas_src>
import functools
import numpy as np
import jax
import jax.numpy as jnp
from jax import lax
from jax.experimental import pallas as pl
from jax.experimental.pallas import tpu as pltpu

LANE = 128      # vreg lane width
SUB = 8         # vreg sublane count
TM_MAX = 2048   # default max rows per block (f32 tile = 1 MiB)


def _bce_kernel(*refs, weighted, tm, rows_total, blocks_per_core):
    if weighted:
        inp_ref, tgt_ref, w_ref, out_ref, acc_ref = refs
    else:
        inp_ref, tgt_ref, out_ref, acc_ref = refs
        w_ref = None

    c = pl.program_id(0)   # core / partial-sum axis ("parallel")
    i = pl.program_id(1)   # reduction axis ("arbitrary")

    @pl.when(i == 0)
    def _():
        acc_ref[...] = jnp.zeros_like(acc_ref)

    x = inp_ref[...].astype(jnp.float32)
    t = tgt_ref[...].astype(jnp.float32)

    # PyTorch BCELoss clamps the log terms at -100 to avoid -inf.
    log_x = jnp.maximum(jnp.log(x), jnp.float32(-100.0))
    log_1mx = jnp.maximum(jnp.log(1.0 - x), jnp.float32(-100.0))
    contrib = t * log_x + (1.0 - t) * log_1mx          # positive form; negated in epilogue
    if weighted:
        contrib = contrib * w_ref[...].astype(jnp.float32)

    # Row mask: zero rows of this *logical* block that fall past the (sublane-padded) array.
    # Covers both the partial last block and overshoot steps whose index_map was clamped.
    blk = c * blocks_per_core + i
    row_ids = blk * tm + lax.broadcasted_iota(jnp.int32, (tm, LANE), 0)
    contrib = jnp.where(row_ids < rows_total, contrib, 0.0)

    # Per-step reduction stays on the VPU: fold (tm,128) into the (8,128) accumulator
    # with plain adds (no cross-lane XLU work until the epilogue).
    acc_ref[...] += contrib.reshape(tm // SUB, SUB, LANE).sum(axis=0)

    @pl.when(i == pl.num_programs(1) - 1)
    def _():
        out_ref[...] = jnp.full((1, 1, 1), -jnp.sum(acc_ref[...]), dtype=jnp.float32)


def base_loss(inp, target, weights=None, *, tm_max=TM_MAX):
    """BCELoss(weight=weights)(inp, target), mean reduction. Returns an f32 scalar."""
    assert inp.shape == target.shape
    n = int(np.prod(inp.shape))
    assert n > 0
    weighted = weights is not None

    # Flatten (free for contiguous arrays); pad only up to the next multiple of 8*128 elements
    # so rows are sublane-aligned.  Padded zeros contribute exactly 0 to the sum on both the
    # weighted (w=0) and unweighted (x=0, t=0) paths.
    chunk = SUB * LANE
    n_pad = -(-n // chunk) * chunk

    def prep(a):
        a = jnp.reshape(a, (-1,))
        if n_pad != n:
            a = jnp.pad(a, (0, n_pad - n))
        return jnp.reshape(a, (n_pad // LANE, LANE))

    args = [prep(inp), prep(target)]
    if weighted:
        args.append(prep(jnp.broadcast_to(weights, inp.shape)))

    rows_total = n_pad // LANE                      # multiple of 8
    tm = min(int(tm_max), rows_total)
    tm = max(SUB, (tm // SUB) * SUB)                # sublane-aligned, <= rows_total
    num_blocks = -(-rows_total // tm)
    n_cores = 2 if num_blocks >= 2 else 1           # shard reduction over both v7x TCs
    blocks_per_core = -(-num_blocks // n_cores)
    grid = (n_cores, blocks_per_core)

    def in_map(c, i):
        # Clamp so overshoot steps (odd num_blocks split over 2 cores) re-read the last valid
        # block; their contribution is zeroed by the in-kernel row mask.
        return (jnp.minimum(c * blocks_per_core + i, num_blocks - 1), 0)

    kernel = functools.partial(
        _bce_kernel, weighted=weighted, tm=tm,
        rows_total=rows_total, blocks_per_core=blocks_per_core)

    partials = pl.pallas_call(
        kernel,
        out_shape=jax.ShapeDtypeStruct((n_cores, 1, 1), jnp.float32),
        grid_spec=pltpu.PrefetchScalarGridSpec(
            num_scalar_prefetch=0,
            grid=grid,
            in_specs=[pl.BlockSpec((tm, LANE), in_map)] * len(args),
            out_specs=pl.BlockSpec((1, 1, 1), lambda c, i: (c, 0, 0)),
            scratch_shapes=[pltpu.VMEM((SUB, LANE), jnp.float32)],
        ),
        compiler_params=pltpu.CompilerParams(
            dimension_semantics=("parallel", "arbitrary"),
            vmem_limit_bytes=32 * 1024 * 1024,
        ),
    )(*args)

    # TODO(synk): if input sizes vary a lot at runtime, pass rows_total / 1/n via scalar
    # prefetch instead of baking them in (avoids per-shape recompiles).
    return jnp.sum(partials) * jnp.float32(1.0 / n)


def _ref_loss(x, t, w=None):
    log_x = jnp.maximum(jnp.log(x), -100.0)
    log_1mx = jnp.maximum(jnp.log(1.0 - x), -100.0)
    per = -(t * log_x + (1.0 - t) * log_1mx)
    if w is not None:
        per = per * w
    return jnp.mean(per)


if __name__ == "__main__":
    key = jax.random.PRNGKey(0)
    k1, k2, k3, k4, k5 = jax.random.split(key, 5)

    # NCHW inputs, values in (0, 1) as BCELoss requires.
    shape = (2, 4, 16, 16)
    x = jax.nn.sigmoid(jax.random.normal(k1, shape, dtype=jnp.float32))
    t = (jax.random.uniform(k2, shape) > 0.5).astype(jnp.float32)
    w = jax.random.uniform(k3, shape, dtype=jnp.float32) + 0.5

    out = jax.block_until_ready(base_loss(x, t, w))
    ref = _ref_loss(x, t, w)
    assert jnp.allclose(out, ref, rtol=1e-5, atol=1e-6), (out, ref)

    # weights=None path (no third input stream).
    out_nw = jax.block_until_ready(base_loss(x, t, None))
    ref_nw = _ref_loss(x, t, None)
    assert jnp.allclose(out_nw, ref_nw, rtol=1e-5, atol=1e-6), (out_nw, ref_nw)

    # Ragged element count (not a multiple of 8*128) -> exercises the tiny-pad + mask path.
    shape_r = (3, 5, 7, 11)
    xr = jax.nn.sigmoid(jax.random.normal(k4, shape_r, dtype=jnp.float32))
    tr = (jax.random.uniform(k5, shape_r) > 0.5).astype(jnp.float32)
    out_r = jax.block_until_ready(base_loss(xr, tr, None))
    ref_r = _ref_loss(xr, tr, None)
    assert jnp.allclose(out_r, ref_r, rtol=1e-5, atol=1e-6), (out_r, ref_r)

    # Small tm_max -> 5 blocks split over the 2-way grid (odd count) -> exercises the
    # clamped index_map + row-mask path used by the multi-core split.
    shape_m = (5, 1, 32, 32)   # 5120 elements -> 40 rows -> 5 blocks at tm=8
    xm = jax.nn.sigmoid(jax.random.normal(k1, shape_m, dtype=jnp.float32))
    tm_ = (jax.random.uniform(k2, shape_m) > 0.5).astype(jnp.float32)
    wm = jax.random.uniform(k3, shape_m, dtype=jnp.float32) + 0.5
    out_m = jax.block_until_ready(base_loss(xm, tm_, wm, tm_max=8))
    ref_m = _ref_loss(xm, tm_, wm)
    assert jnp.allclose(out_m, ref_m, rtol=1e-5, atol=1e-6), (out_m, ref_m)

    print("KERNEL_OK")
</pallas_src>

<mosaic_0001>
module attributes {stable_mosaic.version = 11 : i64} {
  func.func @_bce_kernel(%arg0: i32, %arg1: i32, %arg2: memref<16x128xf32, #tpu.memory_space<vmem>>, %arg3: memref<16x128xf32, #tpu.memory_space<vmem>>, %arg4: memref<16x128xf32, #tpu.memory_space<vmem>>, %arg5: memref<1x1x1xf32, #tpu.memory_space<vmem>>, %arg6: memref<8x128xf32, #tpu.memory_space<vmem>>) attributes {dimension_semantics = [#tpu.dimension_semantics<parallel>, #tpu.dimension_semantics<arbitrary>], iteration_bounds = array<i64: 1, 1>, scalar_prefetch = 0 : i64, scratch_operands = 1 : i64, tpu.core_type = #tpu.core_type<tc>, window_params = [{transform_indices = @transform_0, window_bounds = array<i64: 16, 128>}, {transform_indices = @transform_1, window_bounds = array<i64: 16, 128>}, {transform_indices = @transform_2, window_bounds = array<i64: 16, 128>}, {transform_indices = @transform_3, window_bounds = array<i64: 1, 1, 1>}]} {
    %c0_i32 = arith.constant 0 : i32
    %0 = arith.cmpi eq, %arg1, %c0_i32 : i32
    %1 = arith.extui %0 : i1 to i32
    %c0_i32_0 = arith.constant 0 : i32
    %2 = arith.cmpi ne, %1, %c0_i32_0 : i32
    scf.if %2 {
      %cst_18 = arith.constant 0.000000e+00 : f32
      %38 = vector.broadcast %cst_18 : f32 to vector<8x128xf32>
      %c0_19 = arith.constant 0 : index
      %c0_20 = arith.constant 0 : index
      %39 = vector.load %arg6[%c0_19, %c0_20] : memref<8x128xf32, #tpu.memory_space<vmem>>, vector<8x128xf32>
      tpu.vector_store %arg6[%c0_19, %c0_20], %38 {strides = array<i32>} : memref<8x128xf32, #tpu.memory_space<vmem>>, vector<8x128xf32>,
    } else {
    }
    %c0 = arith.constant 0 : index
    %c0_1 = arith.constant 0 : index
    %3 = vector.load %arg2[%c0, %c0_1] : memref<16x128xf32, #tpu.memory_space<vmem>>, vector<16x128xf32>
    %c0_2 = arith.constant 0 : index
    %c0_3 = arith.constant 0 : index
    %4 = vector.load %arg3[%c0_2, %c0_3] : memref<16x128xf32, #tpu.memory_space<vmem>>, vector<16x128xf32>
    %5 = math.log %3 : vector<16x128xf32>
    %cst = arith.constant -1.000000e+02 : f32
    %6 = vector.broadcast %cst : f32 to vector<16x128xf32>
    %7 = arith.maximumf %5, %6 : vector<16x128xf32>
    %cst_4 = arith.constant 1.000000e+00 : f32
    %8 = vector.broadcast %cst_4 : f32 to vector<16x128xf32>
    %9 = arith.subf %8, %3 : vector<16x128xf32>
    %10 = math.log %9 : vector<16x128xf32>
    %cst_5 = arith.constant -1.000000e+02 : f32
    %11 = vector.broadcast %cst_5 : f32 to vector<16x128xf32>
    %12 = arith.maximumf %10, %11 : vector<16x128xf32>
    %13 = arith.mulf %4, %7 : vector<16x128xf32>
    %cst_6 = arith.constant 1.000000e+00 : f32
    %14 = vector.broadcast %cst_6 : f32 to vector<16x128xf32>
    %15 = arith.subf %14, %4 : vector<16x128xf32>
    %16 = arith.mulf %15, %12 : vector<16x128xf32>
    %17 = arith.addf %13, %16 : vector<16x128xf32>
    %c0_7 = arith.constant 0 : index
    %c0_8 = arith.constant 0 : index
    %18 = vector.load %arg4[%c0_7, %c0_8] : memref<16x128xf32, #tpu.memory_space<vmem>>, vector<16x128xf32>
    %19 = arith.mulf %17, %18 : vector<16x128xf32>
    %c1_i32 = arith.constant 1 : i32
    %20 = arith.muli %arg0, %c1_i32 : i32
    %21 = arith.addi %20, %arg1 : i32
    %c16_i32 = arith.constant 16 : i32
    %22 = arith.muli %21, %c16_i32 : i32
    %23 = tpu.iota {dimensions = array<i32: 0>} : vector<16x128xi32>
    %24 = vector.broadcast %22 : i32 to vector<16x128xi32>
    %25 = arith.addi %24, %23 : vector<16x128xi32>
    %c16_i32_9 = arith.constant 16 : i32
    %26 = vector.broadcast %c16_i32_9 : i32 to vector<16x128xi32>
    %27 = arith.cmpi slt, %25, %26 : vector<16x128xi32>
    %cst_10 = arith.constant 0.000000e+00 : f32
    %28 = vector.broadcast %cst_10 : f32 to vector<16x128xf32>
    %29 = arith.select %27, %19, %28 : vector<16x128xi1>, vector<16x128xf32>
    %c0_11 = arith.constant 0 : index
    %c0_12 = arith.constant 0 : index
    %30 = vector.load %arg6[%c0_11, %c0_12] : memref<8x128xf32, #tpu.memory_space<vmem>>, vector<8x128xf32>
    %31 = vector.shape_cast %29 : vector<16x128xf32> to vector<2x8x128xf32>
    %cst_13 = arith.constant dense<0.000000e+00> : vector<8x128xf32>
    %32 = vector.multi_reduction <add>, %31, %cst_13 [0] : vector<2x8x128xf32> to vector<8x128xf32>
    %33 = arith.addf %30, %32 : vector<8x128xf32>
    %c0_14 = arith.constant 0 : index
    %c0_15 = arith.constant 0 : index
    %34 = vector.load %arg6[%c0_14, %c0_15] : memref<8x128xf32, #tpu.memory_space<vmem>>, vector<8x128xf32>
    tpu.vector_store %arg6[%c0_14, %c0_15], %33 {strides = array<i32>} : memref<8x128xf32, #tpu.memory_space<vmem>>, vector<8x128xf32>,
    %c0_i32_16 = arith.constant 0 : i32
    %35 = arith.cmpi eq, %arg1, %c0_i32_16 : i32
    %36 = arith.extui %35 : i1 to i32
    %c0_i32_17 = arith.constant 0 : i32
    %37 = arith.cmpi ne, %36, %c0_i32_17 : i32
    scf.if %37 {
      %c0_18 = arith.constant 0 : index
      %c0_19 = arith.constant 0 : index
      %38 = vector.load %arg6[%c0_18, %c0_19] : memref<8x128xf32, #tpu.memory_space<vmem>>, vector<8x128xf32>
      %39 = vector.shape_cast %38 : vector<8x128xf32> to vector<1x8x128xf32>
      %cst_20 = arith.constant dense<0.000000e+00> : vector<1xf32>
      %40 = vector.multi_reduction <add>, %39, %cst_20 [1, 2] : vector<1x8x128xf32> to vector<1xf32>
      %41 = vector.shape_cast %40 : vector<1xf32> to vector<1x1x1xf32>
      %42 = vector.extract %41[0, 0, 0] : f32 from vector<1x1x1xf32>
      %cst_21 = arith.constant 0.000000e+00 : f32
      %43 = arith.subf %cst_21, %42 : f32
      %44 = vector.broadcast %43 : f32 to vector<1x1x1xf32>
      %c0_22 = arith.constant 0 : index
      %c0_23 = arith.constant 0 : index
      %c0_24 = arith.constant 0 : index
      %45 = vector.load %arg5[%c0_22, %c0_23, %c0_24] : memref<1x1x1xf32, #tpu.memory_space<vmem>>, vector<1x1x1xf32>
      tpu.vector_store %arg5[%c0_22, %c0_23, %c0_24], %44 {strides = array<i32>} : memref<1x1x1xf32, #tpu.memory_space<vmem>>, vector<1x1x1xf32>,
    } else {
    }
    return
  }
  func.func @transform_0(%arg0: i32, %arg1: i32) -> (i32, i32) {
    %c1_i32 = arith.constant 1 : i32
    %0 = arith.muli %arg0, %c1_i32 : i32
    %1 = arith.addi %0, %arg1 : i32
    %c0_i32 = arith.constant 0 : i32
    %2 = arith.minsi %1, %c0_i32 : i32
    %c0_i32_0 = arith.constant 0 : i32
    %c0_i32_1 = arith.constant 0 : i32
    return %2, %c0_i32_0 : i32, i32
  }
  func.func @transform_1(%arg0: i32, %arg1: i32) -> (i32, i32) {
    %c1_i32 = arith.constant 1 : i32
    %0 = arith.muli %arg0, %c1_i32 : i32
    %1 = arith.addi %0, %arg1 : i32
    %c0_i32 = arith.constant 0 : i32
    %2 = arith.minsi %1, %c0_i32 : i32
    %c0_i32_0 = arith.constant 0 : i32
    %c0_i32_1 = arith.constant 0 : i32
    return %2, %c0_i32_0 : i32, i32
  }
  func.func @transform_2(%arg0: i32, %arg1: i32) -> (i32, i32) {
    %c1_i32 = arith.constant 1 : i32
    %0 = arith.muli %arg0, %c1_i32 : i32
    %1 = arith.addi %0, %arg1 : i32
    %c0_i32 = arith.constant 0 : i32
    %2 = arith.minsi %1, %c0_i32 : i32
    %c0_i32_0 = arith.constant 0 : i32
    %c0_i32_1 = arith.constant 0 : i32
    return %2, %c0_i32_0 : i32, i32
  }
  func.func @transform_3(%arg0: i32, %arg1: i32) -> (i32, i32, i32) {
    %c0_i32 = arith.constant 0 : i32
    %c0_i32_0 = arith.constant 0 : i32
    %c0_i32_1 = arith.constant 0 : i32
    return %arg0, %c0_i32, %c0_i32_0 : i32, i32, i32
  }
}

</mosaic_0001>

<llo_original>
// kernel: tpu_custom_call.1
$region0: #{tpu_custom_call.1}
  #allocation0 [shape = 'u32[]', space=smem, size = 0x4, offset = 0x4, fixed_abs, tag = 'smem constant byte address 0x4 - core index']
  #allocation1 [shape = 'u32[144,128]{1,0:T(1,128)}', space=vmem, size = 0x12000, scoped, tag = 'internal scratch']
  #allocation2 [shape = 'f32[8,128]{1,0:T(8,128)}', space=vmem, size = 0x1000, scoped, tag = 'scratch operand']
  %s0 = inlined_call_operand.hbm [shape: f32[16,128], index: 0, kind: input, shape index: {}]
  %s1 = inlined_call_operand.hbm [shape: f32[16,128], index: 1, kind: input, shape index: {}]
  %s2 = inlined_call_operand.hbm [shape: f32[16,128], index: 2, kind: input, shape index: {}]
  %s3 = inlined_call_operand.hbm [shape: f32[1,1,1], index: 3, kind: output, shape index: {}]
  %s4 = sld [smem:[#allocation0]]
  $region42: #{tpu_custom_call.1} parent=0
    _
  %s6 = ssub.s32 1, %s4
  %s7 = scalar_select 0, %s6, %s4
  $region1: #{tpu_custom_call.1} parent=0
    #allocation3 [shape = 'u8[8192]{0}', space=vmem, size = 0x2000, scoped, tag = 'input window, operand 0, single buffered']
    #allocation4 [shape = 's32[1]{0}', space=sflag, size = 0x4, scoped, tag = 'scoped memory for tpu_custom_call.1']
    #allocation5 [shape = 's32[1]{0}', space=sflag, size = 0x4, scoped, tag = 'scoped memory for tpu_custom_call.1']
    #allocation6 [shape = 'u8[8192]{0}', space=vmem, size = 0x2000, scoped, tag = 'input window, operand 1, single buffered']
    #allocation7 [shape = 's32[1]{0}', space=sflag, size = 0x4, scoped, tag = 'scoped memory for tpu_custom_call.1']
    #allocation8 [shape = 'u8[8192]{0}', space=vmem, size = 0x2000, scoped, tag = 'input window, operand 2, single buffered']
    #allocation9 [shape = 'u8[512]{0}', space=vmem, size = 0x400, scoped, tag = 'output window, operand 0, single buffered']
    %8 = vsyncpa [#allocation4], 0
    %9 = vsyncpa [#allocation7], 0
    %10 = vsyncpa [#allocation5], 0
    // Predicated region
    $region2: #{tpu_custom_call.1} parent=1 // pred_check
      _
    $region3: #{tpu_custom_call.1} parent=1 // pred_check_branch
      %12 = sbr.rel (0) target = $region5
    $region4: #{tpu_custom_call.1} parent=1 // pred_region
      %s13 = sadd.s32 0, 0
      %p14 = scmp.lt.s32.totalorder %s13, 0
      %s15 = scalar_select %p14, %s13, 0
      %s16 = smul.u32 2, %s15
      %s18 = ssub.s32 256, 256
      %19 = vsyncadd [#allocation4], %s18
      %s20 = smul.addr %s16, 128
      %s21 = scalar_lea.hbm %s0, %s20
      %s22 = sshll.u32 [#allocation3], 4
      %s23 = int_to_ptr.vmem [resolvable:$true] %s22
      %28 = dma.hbm_to_vmem [thread:$0]  %s21, 256, %s23, [#allocation4], 128, 128, 8
    $region5: #{tpu_custom_call.1} parent=1 // pred_fallthru
      _
    // Predicated region
    $region6: #{tpu_custom_call.1} parent=1 // pred_check
      _
    $region7: #{tpu_custom_call.1} parent=1 // pred_check_branch
      %30 = sbr.rel (0) target = $region9
    $region8: #{tpu_custom_call.1} parent=1 // pred_region
      %s31 = sadd.s32 0, 0
      %p32 = scmp.lt.s32.totalorder %s31, 0
      %s33 = scalar_select %p32, %s31, 0
      %s34 = smul.u32 2, %s33
      %s36 = ssub.s32 256, 256
      %37 = vsyncadd [#allocation7], %s36
      %s38 = smul.addr %s34, 128
      %s39 = scalar_lea.hbm %s1, %s38
      %s40 = sshll.u32 [#allocation6], 4
      %s41 = int_to_ptr.vmem [resolvable:$true] %s40
      %46 = dma.hbm_to_vmem [thread:$0]  %s39, 256, %s41, [#allocation7], 128, 128, 8
    $region9: #{tpu_custom_call.1} parent=1 // pred_fallthru
      _
    // Predicated region
    $region10: #{tpu_custom_call.1} parent=1 // pred_check
      _
    $region11: #{tpu_custom_call.1} parent=1 // pred_check_branch
      %48 = sbr.rel (0) target = $region13
    $region12: #{tpu_custom_call.1} parent=1 // pred_region
      %s49 = sadd.s32 0, 0
      %p50 = scmp.lt.s32.totalorder %s49, 0
      %s51 = scalar_select %p50, %s49, 0
      %s52 = smul.u32 2, %s51
      %s54 = ssub.s32 256, 256
      %55 = vsyncadd [#allocation7], %s54
      %s56 = smul.addr %s52, 128
      %s57 = scalar_lea.hbm %s2, %s56
      %s58 = sshll.u32 [#allocation8], 4
      %s59 = int_to_ptr.vmem [resolvable:$true] %s58
      %64 = dma.hbm_to_vmem [thread:$0]  %s57, 256, %s59, [#allocation7], 128, 128, 8
    $region13: #{tpu_custom_call.1} parent=1 // pred_fallthru
      _
    // Predicated region
    $region14: #{tpu_custom_call.1} parent=1 // pred_check
      _
    $region15: #{tpu_custom_call.1} parent=1 // pred_check_branch
      %66 = sbr.rel (0) target = $region17
    $region16: #{tpu_custom_call.1} parent=1 // pred_region
      %67 = dma.done [#allocation4], 256
    $region17: #{tpu_custom_call.1} parent=1 // pred_fallthru
      _
    // Predicated region
    $region18: #{tpu_custom_call.1} parent=1 // pred_check
      _
    $region19: #{tpu_custom_call.1} parent=1 // pred_check_branch
      %69 = sbr.rel (0) target = $region21
    $region20: #{tpu_custom_call.1} parent=1 // pred_region
      %70 = dma.done [#allocation7], 256
    $region21: #{tpu_custom_call.1} parent=1 // pred_fallthru
      _
    // Predicated region
    $region22: #{tpu_custom_call.1} parent=1 // pred_check
      _
    $region23: #{tpu_custom_call.1} parent=1 // pred_check_branch
      %72 = sbr.rel (0) target = $region25
    $region24: #{tpu_custom_call.1} parent=1 // pred_region
      %73 = dma.done [#allocation7], 256
    $region25: #{tpu_custom_call.1} parent=1 // pred_fallthru
      _
    %s74 = sadd.s32 0, 0
    %p75 = scmp.lt.s32.totalorder %s74, 0
    %s76 = scalar_select %p75, %s74, 0
    %s77 = smul.u32 2, %s76
    %s78 = sadd.s32 0, 0
    %p79 = scmp.lt.s32.totalorder %s78, 0
    %s80 = scalar_select %p79, %s78, 0
    %s81 = smul.u32 2, %s80
    %s82 = sadd.s32 0, 0
    %p83 = scmp.lt.s32.totalorder %s82, 0
    %s84 = scalar_select %p83, %s82, 0
    %s85 = smul.u32 2, %s84
    %p86 = scmp.eq.s32.totalorder 0, 0
    // Predicated region
    $region26: #{tpu_custom_call.1} parent=1 // pred_check
      %p87 = pneg %p86
    $region27: #{tpu_custom_call.1} parent=1 // pred_check_branch
      %89 = sbr.rel (%p87) target = $region29
    $region28: #{tpu_custom_call.1} parent=1 // pred_region
      %90 = vst [vmem:[#allocation2] sm:$0xff] 0.0
    $region29: #{tpu_custom_call.1} parent=1 // pred_fallthru
      _
    %v91 = vld [vmem:[#allocation3] sm:$0xff]
    %v92 = vld [vmem:[#allocation3 + $0x8] sm:$0xff]
    %v93 = vld [vmem:[#allocation6] sm:$0xff]
    %v94 = vld [vmem:[#allocation6 + $0x8] sm:$0xff]
    %v95 = vlog2.pop %v91
    %v96 = vmul.f32 %v95, 0.6931472
    %v97 = vlog2.pop %v92
    %v98 = vmul.f32 %v97, 0.6931472
    %v99 = vmax.f32 %v96, -100.0
    %v100 = vmax.f32 %v98, -100.0
    %v101 = vsub.f32 1.0, %v91
    %v102 = vsub.f32 1.0, %v92
    %v103 = vlog2.pop %v101
    %v104 = vmul.f32 %v103, 0.6931472
    %v105 = vlog2.pop %v102
    %v106 = vmul.f32 %v105, 0.6931472
    %v107 = vmax.f32 %v104, -100.0
    %v108 = vmax.f32 %v106, -100.0
    %v109 = vmul.f32 %v93, %v99
    %v110 = vmul.f32 %v94, %v100
    %v111 = vsub.f32 1.0, %v93
    %v112 = vsub.f32 1.0, %v94
    %v113 = vmul.f32 %v111, %v107
    %v114 = vmul.f32 %v112, %v108
    %v115 = vadd.f32 %v109, %v113
    %v116 = vadd.f32 %v110, %v114
    %v117 = vld [vmem:[#allocation8] sm:$0xff]
    %v118 = vld [vmem:[#allocation8 + $0x8] sm:$0xff]
    %v119 = vmul.f32 %v115, %v117
    %v120 = vmul.f32 %v116, %v118
    %s121 = sadd.s32 0, 0
    %s122 = smul.u32 %s121, 16
    %v123 = vlaneseq
    %v124 = vshrl.u32 %v123, 7
    %v125 = vadd.s32 %v124, 8
    %v126 = vstv %s122
    %v127 = vadd.s32 %v126, %v124
    %v128 = vadd.s32 %v126, %v125
    %vm129 = vcmp.lt.s32.totalorder %v127, 16
    %vm130 = vcmp.lt.s32.totalorder %v128, 16
    %v131 = vsel %vm129, %v119, 0.0
    %v132 = vsel %vm130, %v120, 0.0
    %v133 = vld [vmem:[#allocation2] sm:$0xff]
    %v134 = vadd.f32 %v131, %v132
    %v135 = vadd.f32 %v133, %v134
    %136 = vst [vmem:[#allocation2] sm:$0xff] %v135
    // Predicated region
    $region30: #{tpu_custom_call.1} parent=1 // pred_check
      %p137 = pneg %p86
    $region31: #{tpu_custom_call.1} parent=1 // pred_check_branch
      %139 = sbr.rel (%p137) target = $region33
    $region32: #{tpu_custom_call.1} parent=1 // pred_region
      %v140 = vld [vmem:[#allocation2] sm:$0xff]
      %141 = vadd.xlane.f32.xlu0 %v140
      %v142 = vpop.xlane.xlu0 %141
      %v143 = vrot.slane %v142, 4
      %v144 = vadd.f32 %v142, %v143
      %v145 = vrot.slane %v144, 2
      %v146 = vadd.f32 %v144, %v145
      %v147 = vrot.slane %v146, 1
      %v148 = vadd.f32 %v146, %v147
      %s149 = vtos %v148
      %s150 = ssub.f32 0.0, %s149
      %v151 = vstv %s150
      %vm152 = vcmask 0
      %153 = vst.msk [vmem:[#allocation9] sm:$0x1] %vm152, %v151
    $region33: #{tpu_custom_call.1} parent=1 // pred_fallthru
      _
    // Predicated region
    $region34: #{tpu_custom_call.1} parent=1 // pred_check
      _
    $region35: #{tpu_custom_call.1} parent=1 // pred_check_branch
      %155 = sbr.rel (0) target = $region37
    $region36: #{tpu_custom_call.1} parent=1 // pred_region
      %s157 = ssub.s32 16, 16
      %158 = vsyncadd [#allocation5], %s157
      %s160 = sshll.u32 [#allocation9], 4
      %s161 = int_to_ptr.vmem [resolvable:$true] %s160
      %163 = dma.vmem_to_hbm [thread:$0]  %s161, 16, %s3, [#allocation5]
    $region37: #{tpu_custom_call.1} parent=1 // pred_fallthru
      _
    // Predicated region
    $region38: #{tpu_custom_call.1} parent=1 // pred_check
      _
    $region39: #{tpu_custom_call.1} parent=1 // pred_check_branch
      %165 = sbr.rel (0) target = $region41
    $region40: #{tpu_custom_call.1} parent=1 // pred_region
      %166 = dma.done [#allocation5], 16
    $region41: #{tpu_custom_call.1} parent=1 // pred_fallthru
      _
    %167 = vsyncpa [#allocation4], 1
    %168 = vsyncpa [#allocation7], 1
    %169 = vsyncpa [#allocation5], 1

</llo_original>
